<compile_context>
chip_gen: v7x
topology: tpu7x:2x2x1
jax: 0.10.0
libtpu: 0.0.40
codegen_flags: <defaults>
</compile_context>

<pallas_src>
import math

import jax
import jax.numpy as jnp
import numpy as np
from jax.experimental import pallas as pl
from jax.experimental.pallas import tpu as pltpu


def _tc_per_chip():
    """2 TensorCores per chip on v7x; 1 on v5e/v6e (default 1 if unknown).

    Note: inspected at trace time — only affects tiling (bb / grid), never numerics.
    """
    try:
        kind = jax.devices()[0].device_kind.lower()
    except Exception:
        return 1
    return 2 if ("v7" in kind or "7x" in kind) else 1


def _choose_bb(B, N, CT, num_tc):
    """Batch items per grid step.

    Goals:
      * amortize the ~0.35 us fixed per-grid-step overhead (bb as large as possible),
      * keep the double-buffered blocks well under every generation's scoped-VMEM default
        (v5e 16 MiB, v7x 32 MiB scoped / 64 MiB physical),
      * keep >= 4 grid steps when B allows so input DMA of step i+1 overlaps compute of step i,
      * keep >= 2 steps per TensorCore on v7x so megacore sharding stays balanced.
    """
    per_item = N * CT * (2 + 4) + N * N * 4        # x bf16 in + out f32 + attn f32, bytes/batch
    budget = 8 << 20                               # conservative, leaves headroom everywhere
    cap = max(1, budget // (2 * per_item))         # Pallas double-buffers every block
    target_steps = max(4, 2 * num_tc)
    if B >= target_steps:
        bb = max(1, min(cap, B // target_steps))
    else:
        bb = max(1, min(cap, max(1, B // num_tc)))
    while B % bb:                                  # bb must divide B for a clean grid
        bb -= 1
    if (bb * N) % 8 != 0 and bb != B:              # keep sublane tiling friendly for partial blocks
        bb = B
    return bb


def _make_kernel(N, T, CT, heads, bb):
    hd = T // heads
    inv_heads = 1.0 / heads

    def kernel(x_ref, w_ref, b_ref, p_ref, out_ref, attn_ref):
        x = x_ref[...]                                       # (bb*N, CT) bf16

        # ONE bf16 MXU pass for the whole batch block:
        # fused channel_linear + (scaled) Q | K projection; single f32 bias broadcast.
        qk = jnp.dot(x, w_ref[...], preferred_element_type=jnp.float32) + b_ref[...]
        qk3 = qk.reshape(bb, N, 2 * T)                       # (bb, N, 2T) f32

        # Per-head scaled-dot-product attention weights, batched over the bb batch items.
        attn = jnp.zeros((bb, N, N), jnp.float32)
        for h in range(heads):                               # heads is small & static (1-2 typ.)
            qh = qk3[:, :, h * hd:(h + 1) * hd]              # scale already folded into W
            kh = qk3[:, :, T + h * hd:T + (h + 1) * hd]
            s = jnp.einsum("bnd,bmd->bnm", qh, kh, preferred_element_type=jnp.float32)
            s = s - jnp.max(s, axis=-1, keepdims=True)
            e = jnp.exp(s)
            # exact reciprocal (attn is a user-visible output); 1/heads average folded in here
            attn = attn + e * (pl.reciprocal(jnp.sum(e, axis=-1, keepdims=True)) * inv_heads)
        attn_ref[...] = attn.astype(attn_ref.dtype)

        # PyTorch tail reshape/permute scramble: static 0/1 column-permutation matrix applied on
        # the (otherwise idle) MXU — no host-side gather / transpose pass over x.
        xp = jnp.dot(x, p_ref[...], preferred_element_type=jnp.float32)   # exact column permute
        out = jnp.einsum("bnm,bmk->bnk", attn, xp.reshape(bb, N, CT),
                         preferred_element_type=jnp.float32)
        out_ref[...] = out.reshape(bb * N, CT).astype(out_ref.dtype)

    return kernel


def spatial_mha_pallas(x, wl, bl, win, bin_, heads):
    B, N, C, T = x.shape
    CT = C * T
    hd = T // heads
    scale = 1.0 / math.sqrt(hd)

    # ---- host-side weight folding (all in f32; cast only the final folded operands) ----
    Wq, Wk = win[0:T, :], win[T:2 * T, :]
    bq, bk = bin_[0:T], bin_[T:2 * T]
    # W_eff[c*T + t, e] = wl[c] * W[e, t]   (channel_linear folded into the Q/K projections)
    Wq_eff = (wl[:, None, None] * jnp.transpose(Wq)[None, :, :]).reshape(CT, T) * scale
    Wk_eff = (wl[:, None, None] * jnp.transpose(Wk)[None, :, :]).reshape(CT, T)
    bq_eff = (bl[0] * jnp.sum(Wq, axis=1) + bq) * scale
    bk_eff = bl[0] * jnp.sum(Wk, axis=1) + bk
    w_qk = jnp.concatenate([Wq_eff, Wk_eff], axis=1).astype(jnp.bfloat16)      # (CT, 2T) bf16
    b_qk = jnp.concatenate([bq_eff, bk_eff]).reshape(1, 2 * T)                 # (1, 2T)  f32

    # ---- static output-column permutation (output col c*T+t takes input col t*C+c) ----
    src = np.arange(CT).reshape(T, C).T.reshape(-1)
    P = np.zeros((CT, CT), np.float32)
    P[src, np.arange(CT)] = 1.0
    p_mat = jnp.asarray(P, dtype=jnp.bfloat16)                                 # (CT, CT) 0/1

    # x: plain contiguous reshape (NO gather) + bf16 to halve the kernel's input DMA bytes.
    x2 = x.reshape(B * N, CT).astype(jnp.bfloat16)

    num_tc = _tc_per_chip()
    bb = _choose_bb(B, N, CT, num_tc)
    grid = (B // bb,)

    out2, attn = pl.pallas_call(
        _make_kernel(N, T, CT, heads, bb),
        out_shape=(
            jax.ShapeDtypeStruct((B * N, CT), jnp.float32),
            jax.ShapeDtypeStruct((B, N, N), jnp.float32),
        ),
        grid=grid,
        in_specs=[
            pl.BlockSpec((bb * N, CT), lambda i: (i, 0)),       # x block (flat over batch)
            pl.BlockSpec((CT, 2 * T), lambda i: (0, 0)),        # folded Q|K weight (bf16)
            pl.BlockSpec((1, 2 * T), lambda i: (0, 0)),         # folded Q|K bias   (f32)
            pl.BlockSpec((CT, CT), lambda i: (0, 0)),           # output column permutation
        ],
        out_specs=(
            pl.BlockSpec((bb * N, CT), lambda i: (i, 0)),
            pl.BlockSpec((bb, N, N), lambda i: (i, 0, 0)),
        ),
        compiler_params=pltpu.CompilerParams(dimension_semantics=("parallel",)),
    )(x2, w_qk, b_qk, p_mat)

    return out2.reshape(B, N, C, T), attn


def spatial_mha_ref(x, wl, bl, win, bin_, heads):
    """Pure-JAX reference mirroring the PyTorch forward (f32)."""
    B, N, C, T = x.shape
    x_in = jnp.einsum("bnct,c->bnt", x, wl) + bl[0]
    q = jnp.einsum("bnt,et->bne", x_in, win[0:T]) + bin_[0:T]
    k = jnp.einsum("bnt,et->bne", x_in, win[T:2 * T]) + bin_[T:2 * T]
    hd = T // heads
    scale = 1.0 / math.sqrt(hd)
    qh = q.reshape(B, N, heads, hd).transpose(0, 2, 1, 3)
    kh = k.reshape(B, N, heads, hd).transpose(0, 2, 1, 3)
    s = jnp.einsum("bhnd,bhmd->bhnm", qh * scale, kh)
    attn = jnp.mean(jax.nn.softmax(s, axis=-1), axis=1)
    x_flat = jnp.transpose(x, (0, 2, 3, 1)).reshape(B, C * T, N)
    out = jnp.matmul(x_flat, jnp.transpose(attn, (0, 2, 1)))
    out = jnp.transpose(out.reshape(B, T, C, N), (0, 3, 2, 1))
    return out, attn


if __name__ == "__main__":
    B, N, C, T, H = 2, 8, 4, 16, 2   # (batch, vertices, in_channels, time_steps, heads)
    assert T % H == 0

    key = jax.random.PRNGKey(0)
    k1, k2, k3, k4, k5 = jax.random.split(key, 5)
    x = jax.random.normal(k1, (B, N, C, T), jnp.float32)
    wl = jax.random.normal(k2, (C,), jnp.float32) * 0.2          # channel_linear.weight[0] (1, C)
    bl = jax.random.normal(k3, (1,), jnp.float32) * 0.2          # channel_linear.bias      (1,)
    win = jax.random.normal(k4, (3 * T, T), jnp.float32) * 0.2   # in_proj_weight (3T, T)
    bin_ = jax.random.normal(k5, (3 * T,), jnp.float32) * 0.2    # in_proj_bias   (3T,)

    fn = jax.jit(lambda a, b, c, d, e: spatial_mha_pallas(a, b, c, d, e, heads=H))
    out, attn = fn(x, wl, bl, win, bin_)
    jax.block_until_ready((out, attn))

    ref_out, ref_attn = spatial_mha_ref(x, wl, bl, win, bin_, H)
    assert out.shape == (B, N, C, T) and attn.shape == (B, N, N)
    # bf16 inputs to the MXU dots -> tolerances as admitted by the review (5e-3).
    np.testing.assert_allclose(np.asarray(attn), np.asarray(ref_attn), rtol=5e-3, atol=5e-3)
    np.testing.assert_allclose(np.asarray(out), np.asarray(ref_out), rtol=5e-3, atol=5e-3)
    print("KERNEL_OK")
</pallas_src>

<mosaic_0001>
module attributes {stable_mosaic.version = 11 : i64} {
  func.func @kernel(%arg0: i32, %arg1: memref<16x64xbf16, #tpu.memory_space<vmem>>, %arg2: memref<64x32xbf16, #tpu.memory_space<vmem>>, %arg3: memref<1x32xf32, #tpu.memory_space<vmem>>, %arg4: memref<64x64xbf16, #tpu.memory_space<vmem>>, %arg5: memref<16x64xf32, #tpu.memory_space<vmem>>, %arg6: memref<2x8x8xf32, #tpu.memory_space<vmem>>) attributes {dimension_semantics = [#tpu.dimension_semantics<parallel>], iteration_bounds = array<i64: 1>, scalar_prefetch = 0 : i64, scratch_operands = 0 : i64, tpu.core_type = #tpu.core_type<tc>, window_params = [{transform_indices = @transform_0, window_bounds = array<i64: 16, 64>}, {pipeline_mode = #tpu.pipeline_mode<synchronous>, transform_indices = @transform_1, window_bounds = array<i64: 64, 32>}, {pipeline_mode = #tpu.pipeline_mode<synchronous>, transform_indices = @transform_2, window_bounds = array<i64: 1, 32>}, {pipeline_mode = #tpu.pipeline_mode<synchronous>, transform_indices = @transform_3, window_bounds = array<i64: 64, 64>}, {transform_indices = @transform_4, window_bounds = array<i64: 16, 64>}, {transform_indices = @transform_5, window_bounds = array<i64: 2, 8, 8>}]} {
    %c0 = arith.constant 0 : index
    %c0_0 = arith.constant 0 : index
    %0 = vector.load %arg1[%c0, %c0_0] : memref<16x64xbf16, #tpu.memory_space<vmem>>, vector<16x64xbf16>
    %c0_1 = arith.constant 0 : index
    %c0_2 = arith.constant 0 : index
    %1 = vector.load %arg2[%c0_1, %c0_2] : memref<64x32xbf16, #tpu.memory_space<vmem>>, vector<64x32xbf16>
    %cst = arith.constant dense<0.000000e+00> : vector<16x32xf32>
    %2 = tpu.matmul %0, %1, %cst {dimension_numbers = #tpu.dot_dimension_numbers<[1], [0], [0], [1], [0, 0, 1, 1], [], []>} : vector<16x64xbf16>, vector<64x32xbf16>, vector<16x32xf32> -> vector<16x32xf32>
    %c0_3 = arith.constant 0 : index
    %c0_4 = arith.constant 0 : index
    %3 = vector.load %arg3[%c0_3, %c0_4] : memref<1x32xf32, #tpu.memory_space<vmem>>, vector<1x32xf32>
    %4 = vector.broadcast %3 : vector<1x32xf32> to vector<16x32xf32>
    %5 = arith.addf %2, %4 : vector<16x32xf32>
    %6 = vector.shape_cast %5 : vector<16x32xf32> to vector<2x8x32xf32>
    %cst_5 = arith.constant 0.000000e+00 : f32
    %7 = vector.broadcast %cst_5 : f32 to vector<2x8x8xf32>
    %8 = vector.extract_strided_slice %6 {offsets = [0, 0, 0], sizes = [2, 8, 8], strides = [1, 1, 1]} : vector<2x8x32xf32> to vector<2x8x8xf32>
    %9 = vector.extract_strided_slice %6 {offsets = [0, 0, 16], sizes = [2, 8, 8], strides = [1, 1, 1]} : vector<2x8x32xf32> to vector<2x8x8xf32>
    "tpu.trace_start"() <{level = 10 : i32, message = "bnd,bmd->bnm"}> : () -> ()
    %cst_6 = arith.constant dense<0.000000e+00> : vector<2x8x8xf32>
    %10 = tpu.matmul %8, %9, %cst_6 {dimension_numbers = #tpu.dot_dimension_numbers<[2], [2], [1], [1], [0, 0, 0, 1, 1, 1], [0], [0]>} : vector<2x8x8xf32>, vector<2x8x8xf32>, vector<2x8x8xf32> -> vector<2x8x8xf32>
    "tpu.trace_stop"() : () -> ()
    %cst_7 = arith.constant dense<0xFF800000> : vector<2x8xf32>
    %11 = vector.multi_reduction <maximumf>, %10, %cst_7 [2] : vector<2x8x8xf32> to vector<2x8xf32>
    %12 = vector.shape_cast %11 : vector<2x8xf32> to vector<2x8x1xf32>
    %13 = vector.broadcast %12 : vector<2x8x1xf32> to vector<2x8x8xf32>
    %14 = arith.subf %10, %13 : vector<2x8x8xf32>
    %15 = math.exp %14 : vector<2x8x8xf32>
    %cst_8 = arith.constant dense<0.000000e+00> : vector<2x8xf32>
    %16 = vector.multi_reduction <add>, %15, %cst_8 [2] : vector<2x8x8xf32> to vector<2x8xf32>
    %17 = vector.shape_cast %16 : vector<2x8xf32> to vector<2x8x1xf32>
    %18 = tpu.reciprocal %17 : vector<2x8x1xf32> -> vector<2x8x1xf32>
    %cst_9 = arith.constant 5.000000e-01 : f32
    %19 = vector.broadcast %cst_9 : f32 to vector<2x8x1xf32>
    %20 = arith.mulf %18, %19 : vector<2x8x1xf32>
    %21 = vector.broadcast %20 : vector<2x8x1xf32> to vector<2x8x8xf32>
    %22 = arith.mulf %15, %21 : vector<2x8x8xf32>
    %23 = arith.addf %7, %22 : vector<2x8x8xf32>
    %24 = vector.extract_strided_slice %6 {offsets = [0, 0, 8], sizes = [2, 8, 8], strides = [1, 1, 1]} : vector<2x8x32xf32> to vector<2x8x8xf32>
    %25 = vector.extract_strided_slice %6 {offsets = [0, 0, 24], sizes = [2, 8, 8], strides = [1, 1, 1]} : vector<2x8x32xf32> to vector<2x8x8xf32>
    "tpu.trace_start"() <{level = 10 : i32, message = "bnd,bmd->bnm"}> : () -> ()
    %cst_10 = arith.constant dense<0.000000e+00> : vector<2x8x8xf32>
    %26 = tpu.matmul %24, %25, %cst_10 {dimension_numbers = #tpu.dot_dimension_numbers<[2], [2], [1], [1], [0, 0, 0, 1, 1, 1], [0], [0]>} : vector<2x8x8xf32>, vector<2x8x8xf32>, vector<2x8x8xf32> -> vector<2x8x8xf32>
    "tpu.trace_stop"() : () -> ()
    %cst_11 = arith.constant dense<0xFF800000> : vector<2x8xf32>
    %27 = vector.multi_reduction <maximumf>, %26, %cst_11 [2] : vector<2x8x8xf32> to vector<2x8xf32>
    %28 = vector.shape_cast %27 : vector<2x8xf32> to vector<2x8x1xf32>
    %29 = vector.broadcast %28 : vector<2x8x1xf32> to vector<2x8x8xf32>
    %30 = arith.subf %26, %29 : vector<2x8x8xf32>
    %31 = math.exp %30 : vector<2x8x8xf32>
    %cst_12 = arith.constant dense<0.000000e+00> : vector<2x8xf32>
    %32 = vector.multi_reduction <add>, %31, %cst_12 [2] : vector<2x8x8xf32> to vector<2x8xf32>
    %33 = vector.shape_cast %32 : vector<2x8xf32> to vector<2x8x1xf32>
    %34 = tpu.reciprocal %33 : vector<2x8x1xf32> -> vector<2x8x1xf32>
    %cst_13 = arith.constant 5.000000e-01 : f32
    %35 = vector.broadcast %cst_13 : f32 to vector<2x8x1xf32>
    %36 = arith.mulf %34, %35 : vector<2x8x1xf32>
    %37 = vector.broadcast %36 : vector<2x8x1xf32> to vector<2x8x8xf32>
    %38 = arith.mulf %31, %37 : vector<2x8x8xf32>
    %39 = arith.addf %23, %38 : vector<2x8x8xf32>
    %c0_14 = arith.constant 0 : index
    %c0_15 = arith.constant 0 : index
    %c0_16 = arith.constant 0 : index
    %40 = vector.load %arg6[%c0_14, %c0_15, %c0_16] : memref<2x8x8xf32, #tpu.memory_space<vmem>>, vector<2x8x8xf32>
    tpu.vector_store %arg6[%c0_14, %c0_15, %c0_16], %39 {strides = array<i32>} : memref<2x8x8xf32, #tpu.memory_space<vmem>>, vector<2x8x8xf32>,
    %c0_17 = arith.constant 0 : index
    %c0_18 = arith.constant 0 : index
    %41 = vector.load %arg4[%c0_17, %c0_18] : memref<64x64xbf16, #tpu.memory_space<vmem>>, vector<64x64xbf16>
    %cst_19 = arith.constant dense<0.000000e+00> : vector<16x64xf32>
    %42 = tpu.matmul %0, %41, %cst_19 {dimension_numbers = #tpu.dot_dimension_numbers<[1], [0], [0], [1], [0, 0, 1, 1], [], []>} : vector<16x64xbf16>, vector<64x64xbf16>, vector<16x64xf32> -> vector<16x64xf32>
    %43 = vector.shape_cast %42 : vector<16x64xf32> to vector<2x8x64xf32>
    "tpu.trace_start"() <{level = 10 : i32, message = "bnm,bmk->bnk"}> : () -> ()
    %cst_20 = arith.constant dense<0.000000e+00> : vector<2x8x64xf32>
    %44 = tpu.matmul %39, %43, %cst_20 {dimension_numbers = #tpu.dot_dimension_numbers<[2], [1], [1], [2], [0, 0, 0, 1, 1, 2], [0], [0]>} : vector<2x8x8xf32>, vector<2x8x64xf32>, vector<2x8x64xf32> -> vector<2x8x64xf32>
    "tpu.trace_stop"() : () -> ()
    %45 = vector.shape_cast %44 : vector<2x8x64xf32> to vector<16x64xf32>
    %c0_21 = arith.constant 0 : index
    %c0_22 = arith.constant 0 : index
    %46 = vector.load %arg5[%c0_21, %c0_22] : memref<16x64xf32, #tpu.memory_space<vmem>>, vector<16x64xf32>
    tpu.vector_store %arg5[%c0_21, %c0_22], %45 {strides = array<i32>} : memref<16x64xf32, #tpu.memory_space<vmem>>, vector<16x64xf32>,
    return
  }
  func.func @transform_0(%arg0: i32) -> (i32, i32) {
    %c0_i32 = arith.constant 0 : i32
    %c0_i32_0 = arith.constant 0 : i32
    return %arg0, %c0_i32 : i32, i32
  }
  func.func @transform_1(%arg0: i32) -> (i32, i32) {
    %c0_i32 = arith.constant 0 : i32
    %c0_i32_0 = arith.constant 0 : i32
    %c0_i32_1 = arith.constant 0 : i32
    return %c0_i32, %c0_i32_0 : i32, i32
  }
  func.func @transform_2(%arg0: i32) -> (i32, i32) {
    %c0_i32 = arith.constant 0 : i32
    %c0_i32_0 = arith.constant 0 : i32
    %c0_i32_1 = arith.constant 0 : i32
    return %c0_i32, %c0_i32_0 : i32, i32
  }
  func.func @transform_3(%arg0: i32) -> (i32, i32) {
    %c0_i32 = arith.constant 0 : i32
    %c0_i32_0 = arith.constant 0 : i32
    %c0_i32_1 = arith.constant 0 : i32
    return %c0_i32, %c0_i32_0 : i32, i32
  }
  func.func @transform_4(%arg0: i32) -> (i32, i32) {
    %c0_i32 = arith.constant 0 : i32
    %c0_i32_0 = arith.constant 0 : i32
    return %arg0, %c0_i32 : i32, i32
  }
  func.func @transform_5(%arg0: i32) -> (i32, i32, i32) {
    %c0_i32 = arith.constant 0 : i32
    %c0_i32_0 = arith.constant 0 : i32
    %c0_i32_1 = arith.constant 0 : i32
    return %arg0, %c0_i32, %c0_i32_0 : i32, i32, i32
  }
}

</mosaic_0001>

<llo_original>
// kernel: _lambda_.1
$region0: #{_lambda_.1}
  #allocation0 [shape = 'u32[]', space=smem, size = 0x4, offset = 0x4, fixed_abs, tag = 'smem constant byte address 0x4 - core index']
  #allocation1 [shape = 'u32[144,128]{1,0:T(1,128)}', space=vmem, size = 0x12000, scoped, tag = 'internal scratch']
  %s0 = inlined_call_operand.vmem [shape: bf16[16,64], index: 0, kind: input, shape index: {}]
  %s1 = inlined_call_operand.vmem [shape: bf16[64,32], index: 1, kind: input, shape index: {}]
  %s2 = inlined_call_operand.vmem [shape: f32[1,32], index: 2, kind: input, shape index: {}]
  %s3 = inlined_call_operand.vmem [shape: bf16[64,64], index: 3, kind: input, shape index: {}]
  %s4 = inlined_call_operand.vmem [shape: f32[16,64], index: 4, kind: output, shape index: {0}]
  %s5 = inlined_call_operand.hbm [shape: f32[2,8,8], index: 5, kind: output, shape index: {1}]
  %6 = xla_tuple %s4, %s5
  %s7 = sld [smem:[#allocation0]]
  $region34: #{_lambda_.1} parent=0
    _
  %s9 = ssub.s32 1, %s7
  %s10 = scalar_select 0, %s9, %s7
  $region1: #{_lambda_.1} parent=0
    #allocation2 [shape = 'u8[8192]{0}', space=vmem, size = 0x2000, scoped, tag = 'output window, operand 1, single buffered']
    #allocation3 [shape = 's32[1]{0}', space=sflag, size = 0x4, scoped, tag = 'scoped memory for _lambda_.1']
    %11 = vsyncpa [#allocation3], 0
    // Predicated region
    $region2: #{_lambda_.1} parent=1 // pred_check
      _
    $region3: #{_lambda_.1} parent=1 // pred_check_branch
      %13 = sbr.rel (0) target = $region5
    $region4: #{_lambda_.1} parent=1 // pred_region
      _
    $region5: #{_lambda_.1} parent=1 // pred_fallthru
      _
    // Predicated region
    $region6: #{_lambda_.1} parent=1 // pred_check
      _
    $region7: #{_lambda_.1} parent=1 // pred_check_branch
      %15 = sbr.rel (0) target = $region9
    $region8: #{_lambda_.1} parent=1 // pred_region
      _
    $region9: #{_lambda_.1} parent=1 // pred_fallthru
      _
    // Predicated region
    $region10: #{_lambda_.1} parent=1 // pred_check
      _
    $region11: #{_lambda_.1} parent=1 // pred_check_branch
      %17 = sbr.rel (0) target = $region13
    $region12: #{_lambda_.1} parent=1 // pred_region
      _
    $region13: #{_lambda_.1} parent=1 // pred_fallthru
      _
    // Predicated region
    $region14: #{_lambda_.1} parent=1 // pred_check
      _
    $region15: #{_lambda_.1} parent=1 // pred_check_branch
      %19 = sbr.rel (0) target = $region17
    $region16: #{_lambda_.1} parent=1 // pred_region
      _
    $region17: #{_lambda_.1} parent=1 // pred_fallthru
      _
    %v21 = vld [vmem:[%s0] sm:$0xf]
    %v22 = vld [vmem:[%s0 + $0x4] sm:$0xf]
    %v23 = vld [vmem:[%s1] sm:$0xf]
    %v24 = vld [vmem:[%s1 + $0x4] sm:$0xf]
    %v25 = vld [vmem:[%s1 + $0x8] sm:$0xf]
    %v26 = vld [vmem:[%s1 + $0xc] sm:$0xf]
    %v27 = vld [vmem:[%s1 + $0x10] sm:$0xf]
    %v28 = vld [vmem:[%s1 + $0x14] sm:$0xf]
    %v29 = vld [vmem:[%s1 + $0x18] sm:$0xf]
    %v30 = vld [vmem:[%s1 + $0x1c] sm:$0xf]
    %v31 = vld [vmem:[%s2] sm:$0x1]
    %v33 = vlaneseq
    %v34 = vshrl.u32 %v33, 7
    %v35 = vsub.s32 0, %v34
    %v36 = vrot.slane %v31, %v35
    %v40 = vunpack.c.l.b16 %v21
    %v41 = vunpack.c.l.b16 %v22
    %v42 = vpack.c.b16 %v41, %v40
    %v51 = vunpack.c.l.b16 %v23
    %v52 = vunpack.c.l.b16 %v24
    %v53 = vunpack.c.l.b16 %v25
    %v54 = vunpack.c.l.b16 %v26
    %v55 = vunpack.c.l.b16 %v27
    %v56 = vunpack.c.l.b16 %v28
    %v57 = vunpack.c.l.b16 %v29
    %v58 = vunpack.c.l.b16 %v30
    %v59 = vpack.c.b16 %v52, %v51
    %v60 = vpack.c.b16 %v54, %v53
    %v61 = vpack.c.b16 %v56, %v55
    %v62 = vpack.c.b16 %v58, %v57
    %vm67 = vcmask 523264
    %v69 = vsel %vm67, %v42, 0
    %71 = vmatprep.subr.bf16.mxu0 0
    %72 = vmatpush1.bf16.msra.mxu0 %v59
    %73 = vmatprep.subr.bf16.mxu0 0
    %74 = vmatpush1.bf16.msra.mxu0 %v60
    %75 = vmatprep.subr.bf16.mxu0 0
    %76 = vmatpush1.bf16.msra.mxu0 %v61
    %77 = vmatprep.subr.bf16.mxu0 0
    %78 = vmatpush1.bf16.msra.mxu0 %v62
    %79 = vmatprep.subr.bf16.mxu0 0
    %80 = vmatpush1.bf16.msra.mxu0 0
    %81 = vmatprep.subr.bf16.mxu0 0
    %82 = vmatpush1.bf16.msra.mxu0 0
    %83 = vmatprep.subr.bf16.mxu0 0
    %84 = vmatpush1.bf16.msra.mxu0 0
    %85 = vmatprep.subr.bf16.mxu0 0
    %86 = vmatpush1.bf16.msra.mxu0 0
    %87 = vmatprep.subr.bf16.mxu0 0
    %88 = vmatpush1.bf16.msra.mxu0 0
    %89 = vmatprep.subr.bf16.mxu0 0
    %90 = vmatpush1.bf16.msra.mxu0 0
    %91 = vmatprep.subr.bf16.mxu0 0
    %92 = vmatpush1.bf16.msra.mxu0 0
    %93 = vmatprep.subr.bf16.mxu0 0
    %94 = vmatpush1.bf16.msra.mxu0 0
    %95 = vmatprep.subr.bf16.mxu0 0
    %96 = vmatpush1.bf16.msra.mxu0 0
    %97 = vmatprep.subr.bf16.mxu0 0
    %98 = vmatpush1.bf16.msra.mxu0 0
    %99 = vmatprep.subr.bf16.mxu0 0
    %100 = vmatpush1.bf16.msra.mxu0 0
    %101 = vmatprep.subr.bf16.mxu0 0
    %102 = vmatpush1.bf16.msra.mxu0 0
    %103 = vmatprep.mubr.bf16.mxu0 0
    %104 = vmatmul.mubr.bf16.gmra.mrb[0].mxu0 %v69
    %v105 = vpop.f32.mrb[0].mxu0
    %v106 = vadd.f32 %v36, %v105
    %v107 = vpop.f32.mrb[0].mxu0
    %v108 = vpop.f32.mrb[0].mxu0
    %v109 = vadd.f32 %v36, %v108
    %v110 = vpop.f32.mrb[0].mxu0
    %111 = vdwg.mxu0
    %113 = vrot.lane.b32.xlu0 %v106, 112
    %v114 = vpop.permute.xlu0 %113
    %vm115 = vcmask 64512
    %v116 = vsel %vm115, %v106, 0
    %v118 = vsel %vm115, %v114, 0
    %120 = vmatprep.subr.mxu0 0.0
    %121 = vmatpush1.xpose.msra.mxu0 %v118
    %122 = vmatprep.subr.mxu0 0.0
    %123 = vmatpush1.xpose.msra.mxu0 0.0
    %124 = vmatprep.subr.mxu0 0.0
    %125 = vmatpush1.xpose.msra.mxu0 0.0
    %126 = vmatprep.subr.mxu0 0.0
    %127 = vmatpush1.xpose.msra.mxu0 0.0
    %128 = vmatprep.subr.mxu0 0.0
    %129 = vmatpush1.xpose.msra.mxu0 0.0
    %130 = vmatprep.subr.mxu0 0.0
    %131 = vmatpush1.xpose.msra.mxu0 0.0
    %132 = vmatprep.subr.mxu0 0.0
    %133 = vmatpush1.xpose.msra.mxu0 0.0
    %134 = vmatprep.subr.mxu0 0.0
    %135 = vmatpush1.xpose.msra.mxu0 0.0
    %136 = vmatprep.subr.mxu0 0.0
    %137 = vmatpush1.xpose.msra.mxu0 0.0
    %138 = vmatprep.subr.mxu0 0.0
    %139 = vmatpush1.xpose.msra.mxu0 0.0
    %140 = vmatprep.subr.mxu0 0.0
    %141 = vmatpush1.xpose.msra.mxu0 0.0
    %142 = vmatprep.subr.mxu0 0.0
    %143 = vmatpush1.xpose.msra.mxu0 0.0
    %144 = vmatprep.subr.mxu0 0.0
    %145 = vmatpush1.xpose.msra.mxu0 0.0
    %146 = vmatprep.subr.mxu0 0.0
    %147 = vmatpush1.xpose.msra.mxu0 0.0
    %148 = vmatprep.subr.mxu0 0.0
    %149 = vmatpush1.xpose.msra.mxu0 0.0
    %150 = vmatprep.subr.mxu0 0.0
    %151 = vmatpush1.xpose.msra.mxu0 0.0
    %152 = vmatprep.subr.mxu0 0.0
    %153 = vmatpush1.xpose.msra.mxu0 0.0
    %154 = vmatprep.subr.mxu0 0.0
    %155 = vmatpush1.xpose.msra.mxu0 0.0
    %156 = vmatprep.subr.mxu0 0.0
    %157 = vmatpush1.xpose.msra.mxu0 0.0
    %158 = vmatprep.subr.mxu0 0.0
    %159 = vmatpush1.xpose.msra.mxu0 0.0
    %160 = vmatprep.subr.mxu0 0.0
    %161 = vmatpush1.xpose.msra.mxu0 0.0
    %162 = vmatprep.subr.mxu0 0.0
    %163 = vmatpush1.xpose.msra.mxu0 0.0
    %164 = vmatprep.subr.mxu0 0.0
    %165 = vmatpush1.xpose.msra.mxu0 0.0
    %166 = vmatprep.subr.mxu0 0.0
    %167 = vmatpush1.xpose.msra.mxu0 0.0
    %168 = vmatprep.subr.mxu0 0.0
    %169 = vmatpush1.xpose.msra.mxu0 0.0
    %170 = vmatprep.subr.mxu0 0.0
    %171 = vmatpush1.xpose.msra.mxu0 0.0
    %172 = vmatprep.subr.mxu0 0.0
    %173 = vmatpush1.xpose.msra.mxu0 0.0
    %174 = vmatprep.subr.mxu0 0.0
    %175 = vmatpush1.xpose.msra.mxu0 0.0
    %176 = vmatprep.subr.mxu0 0.0
    %177 = vmatpush1.xpose.msra.mxu0 0.0
    %178 = vmatprep.subr.mxu0 0.0
    %179 = vmatpush1.xpose.msra.mxu0 0.0
    %180 = vmatprep.subr.mxu0 0.0
    %181 = vmatpush1.xpose.msra.mxu0 0.0
    %182 = vmatprep.subr.mxu0 0.0
    %183 = vmatpush1.xpose.msra.mxu0 0.0
    %184 = vmatprep.mubr.f32.mxu0 0.0
    %185 = vmatmul.mubr.f32.gmra.mrb[0].mxu0 %v116
    %v186 = vpop.f32.mrb[0].mxu0
    %v187 = vadd.f32 0.0, %v186
    %v188 = vpop.f32.mrb[0].mxu0
    %189 = vdwg.mxu0
    %191 = vrot.lane.b32.xlu0 %v109, 112
    %v192 = vpop.permute.xlu0 %191
    %v193 = vsel %vm115, %v109, 0
    %v195 = vsel %vm115, %v192, 0
    %197 = vmatprep.subr.mxu0 0.0
    %198 = vmatpush1.xpose.msra.mxu0 %v195
    %199 = vmatprep.subr.mxu0 0.0
    %200 = vmatpush1.xpose.msra.mxu0 0.0
    %201 = vmatprep.subr.mxu0 0.0
    %202 = vmatpush1.xpose.msra.mxu0 0.0
    %203 = vmatprep.subr.mxu0 0.0
    %204 = vmatpush1.xpose.msra.mxu0 0.0
    %205 = vmatprep.subr.mxu0 0.0
    %206 = vmatpush1.xpose.msra.mxu0 0.0
    %207 = vmatprep.subr.mxu0 0.0
    %208 = vmatpush1.xpose.msra.mxu0 0.0
    %209 = vmatprep.subr.mxu0 0.0
    %210 = vmatpush1.xpose.msra.mxu0 0.0
    %211 = vmatprep.subr.mxu0 0.0
    %212 = vmatpush1.xpose.msra.mxu0 0.0
    %213 = vmatprep.subr.mxu0 0.0
    %214 = vmatpush1.xpose.msra.mxu0 0.0
    %215 = vmatprep.subr.mxu0 0.0
    %216 = vmatpush1.xpose.msra.mxu0 0.0
    %217 = vmatprep.subr.mxu0 0.0
    %218 = vmatpush1.xpose.msra.mxu0 0.0
    %219 = vmatprep.subr.mxu0 0.0
    %220 = vmatpush1.xpose.msra.mxu0 0.0
    %221 = vmatprep.subr.mxu0 0.0
    %222 = vmatpush1.xpose.msra.mxu0 0.0
    %223 = vmatprep.subr.mxu0 0.0
    %224 = vmatpush1.xpose.msra.mxu0 0.0
    %225 = vmatprep.subr.mxu0 0.0
    %226 = vmatpush1.xpose.msra.mxu0 0.0
    %227 = vmatprep.subr.mxu0 0.0
    %228 = vmatpush1.xpose.msra.mxu0 0.0
    %229 = vmatprep.subr.mxu0 0.0
    %230 = vmatpush1.xpose.msra.mxu0 0.0
    %231 = vmatprep.subr.mxu0 0.0
    %232 = vmatpush1.xpose.msra.mxu0 0.0
    %233 = vmatprep.subr.mxu0 0.0
    %234 = vmatpush1.xpose.msra.mxu0 0.0
    %235 = vmatprep.subr.mxu0 0.0
    %236 = vmatpush1.xpose.msra.mxu0 0.0
    %237 = vmatprep.subr.mxu0 0.0
    %238 = vmatpush1.xpose.msra.mxu0 0.0
    %239 = vmatprep.subr.mxu0 0.0
    %240 = vmatpush1.xpose.msra.mxu0 0.0
    %241 = vmatprep.subr.mxu0 0.0
    %242 = vmatpush1.xpose.msra.mxu0 0.0
    %243 = vmatprep.subr.mxu0 0.0
    %244 = vmatpush1.xpose.msra.mxu0 0.0
    %245 = vmatprep.subr.mxu0 0.0
    %246 = vmatpush1.xpose.msra.mxu0 0.0
    %247 = vmatprep.subr.mxu0 0.0
    %248 = vmatpush1.xpose.msra.mxu0 0.0
    %249 = vmatprep.subr.mxu0 0.0
    %250 = vmatpush1.xpose.msra.mxu0 0.0
    %251 = vmatprep.subr.mxu0 0.0
    %252 = vmatpush1.xpose.msra.mxu0 0.0
    %253 = vmatprep.subr.mxu0 0.0
    %254 = vmatpush1.xpose.msra.mxu0 0.0
    %255 = vmatprep.subr.mxu0 0.0
    %256 = vmatpush1.xpose.msra.mxu0 0.0
    %257 = vmatprep.subr.mxu0 0.0
    %258 = vmatpush1.xpose.msra.mxu0 0.0
    %259 = vmatprep.subr.mxu0 0.0
    %260 = vmatpush1.xpose.msra.mxu0 0.0
    %261 = vmatprep.mubr.f32.mxu0 0.0
    %262 = vmatmul.mubr.f32.gmra.mrb[0].mxu0 %v193
    %v263 = vpop.f32.mrb[0].mxu0
    %v264 = vadd.f32 0.0, %v263
    %v265 = vpop.f32.mrb[0].mxu0
    %266 = vdwg.mxu0
    %v267 = vsel %vm115, %v187, -inf
    %268 = vmax.xlane.f32.xlu0 %v267
    %v269 = vpop.xlane.xlu0 %268
    %v270 = vsel %vm115, %v264, -inf
    %271 = vmax.xlane.f32.xlu0 %v270
    %v272 = vpop.xlane.xlu0 %271
    %v273 = vsub.f32 %v187, %v269
    %v274 = vsub.f32 %v264, %v272
    %v275 = vmul.f32 %v273, 1.442695
    %v276 = vpow.pop %v275
    %v277 = vmul.f32 %v274, 1.442695
    %v278 = vpow.pop %v277
    %v279 = vsel %vm115, %v276, 0.0
    %280 = vadd.xlane.f32.xlu0 %v279
    %v281 = vpop.xlane.xlu0 %280
    %v282 = vsel %vm115, %v278, 0.0
    %283 = vadd.xlane.f32.xlu0 %v282
    %v284 = vpop.xlane.xlu0 %283
    %v285 = vrcp.pop %v281
    %v286 = vrcp.pop %v284
    %v287 = vmul.f32 %v285, 0.5
    %v288 = vmul.f32 %v286, 0.5
    %v289 = vmul.f32 %v276, %v287
    %v290 = vmul.f32 %v278, %v288
    %v291 = vadd.f32 %v289, 0.0
    %v292 = vadd.f32 %v290, 0.0
    %293 = vrot.lane.b32.xlu0 %v106, 120
    %v294 = vpop.permute.xlu0 %293
    %295 = vrot.lane.b32.xlu0 %v106, 104
    %v296 = vpop.permute.xlu0 %295
    %v297 = vsel %vm115, %v294, 0
    %v299 = vsel %vm115, %v296, 0
    %301 = vmatprep.subr.mxu0 0.0
    %302 = vmatpush1.xpose.msra.mxu0 %v299
    %303 = vmatprep.subr.mxu0 0.0
    %304 = vmatpush1.xpose.msra.mxu0 0.0
    %305 = vmatprep.subr.mxu0 0.0
    %306 = vmatpush1.xpose.msra.mxu0 0.0
    %307 = vmatprep.subr.mxu0 0.0
    %308 = vmatpush1.xpose.msra.mxu0 0.0
    %309 = vmatprep.subr.mxu0 0.0
    %310 = vmatpush1.xpose.msra.mxu0 0.0
    %311 = vmatprep.subr.mxu0 0.0
    %312 = vmatpush1.xpose.msra.mxu0 0.0
    %313 = vmatprep.subr.mxu0 0.0
    %314 = vmatpush1.xpose.msra.mxu0 0.0
    %315 = vmatprep.subr.mxu0 0.0
    %316 = vmatpush1.xpose.msra.mxu0 0.0
    %317 = vmatprep.subr.mxu0 0.0
    %318 = vmatpush1.xpose.msra.mxu0 0.0
    %319 = vmatprep.subr.mxu0 0.0
    %320 = vmatpush1.xpose.msra.mxu0 0.0
    %321 = vmatprep.subr.mxu0 0.0
    %322 = vmatpush1.xpose.msra.mxu0 0.0
    %323 = vmatprep.subr.mxu0 0.0
    %324 = vmatpush1.xpose.msra.mxu0 0.0
    %325 = vmatprep.subr.mxu0 0.0
    %326 = vmatpush1.xpose.msra.mxu0 0.0
    %327 = vmatprep.subr.mxu0 0.0
    %328 = vmatpush1.xpose.msra.mxu0 0.0
    %329 = vmatprep.subr.mxu0 0.0
    %330 = vmatpush1.xpose.msra.mxu0 0.0
    %331 = vmatprep.subr.mxu0 0.0
    %332 = vmatpush1.xpose.msra.mxu0 0.0
    %333 = vmatprep.subr.mxu0 0.0
    %334 = vmatpush1.xpose.msra.mxu0 0.0
    %335 = vmatprep.subr.mxu0 0.0
    %336 = vmatpush1.xpose.msra.mxu0 0.0
    %337 = vmatprep.subr.mxu0 0.0
    %338 = vmatpush1.xpose.msra.mxu0 0.0
    %339 = vmatprep.subr.mxu0 0.0
    %340 = vmatpush1.xpose.msra.mxu0 0.0
    %341 = vmatprep.subr.mxu0 0.0
    %342 = vmatpush1.xpose.msra.mxu0 0.0
    %343 = vmatprep.subr.mxu0 0.0
    %344 = vmatpush1.xpose.msra.mxu0 0.0
    %345 = vmatprep.subr.mxu0 0.0
    %346 = vmatpush1.xpose.msra.mxu0 0.0
    %347 = vmatprep.subr.mxu0 0.0
    %348 = vmatpush1.xpose.msra.mxu0 0.0
    %349 = vmatprep.subr.mxu0 0.0
    %350 = vmatpush1.xpose.msra.mxu0 0.0
    %351 = vmatprep.subr.mxu0 0.0
    %352 = vmatpush1.xpose.msra.mxu0 0.0
    %353 = vmatprep.subr.mxu0 0.0
    %354 = vmatpush1.xpose.msra.mxu0 0.0
    %355 = vmatprep.subr.mxu0 0.0
    %356 = vmatpush1.xpose.msra.mxu0 0.0
    %357 = vmatprep.subr.mxu0 0.0
    %358 = vmatpush1.xpose.msra.mxu0 0.0
    %359 = vmatprep.subr.mxu0 0.0
    %360 = vmatpush1.xpose.msra.mxu0 0.0
    %361 = vmatprep.subr.mxu0 0.0
    %362 = vmatpush1.xpose.msra.mxu0 0.0
    %363 = vmatprep.subr.mxu0 0.0
    %364 = vmatpush1.xpose.msra.mxu0 0.0
    %365 = vmatprep.mubr.f32.mxu0 0.0
    %366 = vmatmul.mubr.f32.gmra.mrb[0].mxu0 %v297
    %v367 = vpop.f32.mrb[0].mxu0
    %v368 = vadd.f32 0.0, %v367
    %v369 = vpop.f32.mrb[0].mxu0
    %370 = vdwg.mxu0
    %371 = vrot.lane.b32.xlu0 %v109, 120
    %v372 = vpop.permute.xlu0 %371
    %373 = vrot.lane.b32.xlu0 %v109, 104
    %v374 = vpop.permute.xlu0 %373
    %v375 = vsel %vm115, %v372, 0
    %v377 = vsel %vm115, %v374, 0
    %379 = vmatprep.subr.mxu0 0.0
    %380 = vmatpush1.xpose.msra.mxu0 %v377
    %381 = vmatprep.subr.mxu0 0.0
    %382 = vmatpush1.xpose.msra.mxu0 0.0
    %383 = vmatprep.subr.mxu0 0.0
    %384 = vmatpush1.xpose.msra.mxu0 0.0
    %385 = vmatprep.subr.mxu0 0.0
    %386 = vmatpush1.xpose.msra.mxu0 0.0
    %387 = vmatprep.subr.mxu0 0.0
    %388 = vmatpush1.xpose.msra.mxu0 0.0
    %389 = vmatprep.subr.mxu0 0.0
    %390 = vmatpush1.xpose.msra.mxu0 0.0
    %391 = vmatprep.subr.mxu0 0.0
    %392 = vmatpush1.xpose.msra.mxu0 0.0
    %393 = vmatprep.subr.mxu0 0.0
    %394 = vmatpush1.xpose.msra.mxu0 0.0
    %395 = vmatprep.subr.mxu0 0.0
    %396 = vmatpush1.xpose.msra.mxu0 0.0
    %397 = vmatprep.subr.mxu0 0.0
    %398 = vmatpush1.xpose.msra.mxu0 0.0
    %399 = vmatprep.subr.mxu0 0.0
    %400 = vmatpush1.xpose.msra.mxu0 0.0
    %401 = vmatprep.subr.mxu0 0.0
    %402 = vmatpush1.xpose.msra.mxu0 0.0
    %403 = vmatprep.subr.mxu0 0.0
    %404 = vmatpush1.xpose.msra.mxu0 0.0
    %405 = vmatprep.subr.mxu0 0.0
    %406 = vmatpush1.xpose.msra.mxu0 0.0
    %407 = vmatprep.subr.mxu0 0.0
    %408 = vmatpush1.xpose.msra.mxu0 0.0
    %409 = vmatprep.subr.mxu0 0.0
    %410 = vmatpush1.xpose.msra.mxu0 0.0
    %411 = vmatprep.subr.mxu0 0.0
    %412 = vmatpush1.xpose.msra.mxu0 0.0
    %413 = vmatprep.subr.mxu0 0.0
    %414 = vmatpush1.xpose.msra.mxu0 0.0
    %415 = vmatprep.subr.mxu0 0.0
    %416 = vmatpush1.xpose.msra.mxu0 0.0
    %417 = vmatprep.subr.mxu0 0.0
    %418 = vmatpush1.xpose.msra.mxu0 0.0
    %419 = vmatprep.subr.mxu0 0.0
    %420 = vmatpush1.xpose.msra.mxu0 0.0
    %421 = vmatprep.subr.mxu0 0.0
    %422 = vmatpush1.xpose.msra.mxu0 0.0
    %423 = vmatprep.subr.mxu0 0.0
    %424 = vmatpush1.xpose.msra.mxu0 0.0
    %425 = vmatprep.subr.mxu0 0.0
    %426 = vmatpush1.xpose.msra.mxu0 0.0
    %427 = vmatprep.subr.mxu0 0.0
    %428 = vmatpush1.xpose.msra.mxu0 0.0
    %429 = vmatprep.subr.mxu0 0.0
    %430 = vmatpush1.xpose.msra.mxu0 0.0
    %431 = vmatprep.subr.mxu0 0.0
    %432 = vmatpush1.xpose.msra.mxu0 0.0
    %433 = vmatprep.subr.mxu0 0.0
    %434 = vmatpush1.xpose.msra.mxu0 0.0
    %435 = vmatprep.subr.mxu0 0.0
    %436 = vmatpush1.xpose.msra.mxu0 0.0
    %437 = vmatprep.subr.mxu0 0.0
    %438 = vmatpush1.xpose.msra.mxu0 0.0
    %439 = vmatprep.subr.mxu0 0.0
    %440 = vmatpush1.xpose.msra.mxu0 0.0
    %441 = vmatprep.subr.mxu0 0.0
    %442 = vmatpush1.xpose.msra.mxu0 0.0
    %443 = vmatprep.mubr.f32.mxu0 0.0
    %444 = vmatmul.mubr.f32.gmra.mrb[0].mxu0 %v375
    %v445 = vpop.f32.mrb[0].mxu0
    %v446 = vadd.f32 0.0, %v445
    %v447 = vpop.f32.mrb[0].mxu0
    %448 = vdwg.mxu0
    %v449 = vsel %vm115, %v368, -inf
    %450 = vmax.xlane.f32.xlu0 %v449
    %v451 = vpop.xlane.xlu0 %450
    %v452 = vsel %vm115, %v446, -inf
    %453 = vmax.xlane.f32.xlu0 %v452
    %v454 = vpop.xlane.xlu0 %453
    %v455 = vsub.f32 %v368, %v451
    %v456 = vsub.f32 %v446, %v454
    %v457 = vmul.f32 %v455, 1.442695
    %v458 = vpow.pop %v457
    %v459 = vmul.f32 %v456, 1.442695
    %v460 = vpow.pop %v459
    %v461 = vsel %vm115, %v458, 0.0
    %462 = vadd.xlane.f32.xlu0 %v461
    %v463 = vpop.xlane.xlu0 %462
    %v464 = vsel %vm115, %v460, 0.0
    %465 = vadd.xlane.f32.xlu0 %v464
    %v466 = vpop.xlane.xlu0 %465
    %v467 = vrcp.pop %v463
    %v468 = vrcp.pop %v466
    %v469 = vmul.f32 %v467, 0.5
    %v470 = vmul.f32 %v468, 0.5
    %v471 = vmul.f32 %v458, %v469
    %v472 = vmul.f32 %v460, %v470
    %v473 = vadd.f32 %v291, %v471
    %v474 = vadd.f32 %v292, %v472
    %475 = vst.msk [vmem:[#allocation2] sm:$0xff] %vm115, %v473
    %476 = vst.msk [vmem:[#allocation2 + $0x8] sm:$0xff] %vm115, %v474
    %v477 = vld [vmem:[%s3] sm:$0xf]
    %v478 = vld [vmem:[%s3 + $0x4] sm:$0xf]
    %v479 = vld [vmem:[%s3 + $0x8] sm:$0xf]
    %v480 = vld [vmem:[%s3 + $0xc] sm:$0xf]
    %v481 = vld [vmem:[%s3 + $0x10] sm:$0xf]
    %v482 = vld [vmem:[%s3 + $0x14] sm:$0xf]
    %v483 = vld [vmem:[%s3 + $0x18] sm:$0xf]
    %v484 = vld [vmem:[%s3 + $0x1c] sm:$0xf]
    %v493 = vunpack.c.l.b16 %v477
    %v494 = vunpack.c.l.b16 %v478
    %v495 = vunpack.c.l.b16 %v479
    %v496 = vunpack.c.l.b16 %v480
    %v497 = vunpack.c.l.b16 %v481
    %v498 = vunpack.c.l.b16 %v482
    %v499 = vunpack.c.l.b16 %v483
    %v500 = vunpack.c.l.b16 %v484
    %v501 = vpack.c.b16 %v494, %v493
    %v502 = vpack.c.b16 %v496, %v495
    %v503 = vpack.c.b16 %v498, %v497
    %v504 = vpack.c.b16 %v500, %v499
    %509 = vmatprep.subr.bf16.mxu0 0
    %510 = vmatpush1.bf16.msra.mxu0 %v501
    %511 = vmatprep.subr.bf16.mxu0 0
    %512 = vmatpush1.bf16.msra.mxu0 %v502
    %513 = vmatprep.subr.bf16.mxu0 0
    %514 = vmatpush1.bf16.msra.mxu0 %v503
    %515 = vmatprep.subr.bf16.mxu0 0
    %516 = vmatpush1.bf16.msra.mxu0 %v504
    %517 = vmatprep.subr.bf16.mxu0 0
    %518 = vmatpush1.bf16.msra.mxu0 0
    %519 = vmatprep.subr.bf16.mxu0 0
    %520 = vmatpush1.bf16.msra.mxu0 0
    %521 = vmatprep.subr.bf16.mxu0 0
    %522 = vmatpush1.bf16.msra.mxu0 0
    %523 = vmatprep.subr.bf16.mxu0 0
    %524 = vmatpush1.bf16.msra.mxu0 0
    %525 = vmatprep.subr.bf16.mxu0 0
    %526 = vmatpush1.bf16.msra.mxu0 0
    %527 = vmatprep.subr.bf16.mxu0 0
    %528 = vmatpush1.bf16.msra.mxu0 0
    %529 = vmatprep.subr.bf16.mxu0 0
    %530 = vmatpush1.bf16.msra.mxu0 0
    %531 = vmatprep.subr.bf16.mxu0 0
    %532 = vmatpush1.bf16.msra.mxu0 0
    %533 = vmatprep.subr.bf16.mxu0 0
    %534 = vmatpush1.bf16.msra.mxu0 0
    %535 = vmatprep.subr.bf16.mxu0 0
    %536 = vmatpush1.bf16.msra.mxu0 0
    %537 = vmatprep.subr.bf16.mxu0 0
    %538 = vmatpush1.bf16.msra.mxu0 0
    %539 = vmatprep.subr.bf16.mxu0 0
    %540 = vmatpush1.bf16.msra.mxu0 0
    %541 = vmatprep.mubr.bf16.mxu0 0
    %542 = vmatmul.mubr.bf16.gmra.mrb[0].mxu0 %v69
    %v543 = vpop.f32.mrb[0].mxu0
    %v544 = vadd.f32 0.0, %v543
    %v545 = vpop.f32.mrb[0].mxu0
    %v546 = vpop.f32.mrb[0].mxu0
    %v547 = vadd.f32 0.0, %v546
    %v548 = vpop.f32.mrb[0].mxu0
    %549 = vdwg.mxu0
    %v551 = vsel %vm115, %v473, 0
    %553 = vmatprep.subr.mxu0 0.0
    %554 = vmatpush1.msra.mxu0 %v544
    %555 = vmatprep.subr.mxu0 0.0
    %556 = vmatpush1.msra.mxu0 0.0
    %557 = vmatprep.subr.mxu0 0.0
    %558 = vmatpush1.msra.mxu0 0.0
    %559 = vmatprep.subr.mxu0 0.0
    %560 = vmatpush1.msra.mxu0 0.0
    %561 = vmatprep.subr.mxu0 0.0
    %562 = vmatpush1.msra.mxu0 0.0
    %563 = vmatprep.subr.mxu0 0.0
    %564 = vmatpush1.msra.mxu0 0.0
    %565 = vmatprep.subr.mxu0 0.0
    %566 = vmatpush1.msra.mxu0 0.0
    %567 = vmatprep.subr.mxu0 0.0
    %568 = vmatpush1.msra.mxu0 0.0
    %569 = vmatprep.subr.mxu0 0.0
    %570 = vmatpush1.msra.mxu0 0.0
    %571 = vmatprep.subr.mxu0 0.0
    %572 = vmatpush1.msra.mxu0 0.0
    %573 = vmatprep.subr.mxu0 0.0
    %574 = vmatpush1.msra.mxu0 0.0
    %575 = vmatprep.subr.mxu0 0.0
    %576 = vmatpush1.msra.mxu0 0.0
    %577 = vmatprep.subr.mxu0 0.0
    %578 = vmatpush1.msra.mxu0 0.0
    %579 = vmatprep.subr.mxu0 0.0
    %580 = vmatpush1.msra.mxu0 0.0
    %581 = vmatprep.subr.mxu0 0.0
    %582 = vmatpush1.msra.mxu0 0.0
    %583 = vmatprep.subr.mxu0 0.0
    %584 = vmatpush1.msra.mxu0 0.0
    %585 = vmatprep.subr.mxu0 0.0
    %586 = vmatpush1.msra.mxu0 0.0
    %587 = vmatprep.subr.mxu0 0.0
    %588 = vmatpush1.msra.mxu0 0.0
    %589 = vmatprep.subr.mxu0 0.0
    %590 = vmatpush1.msra.mxu0 0.0
    %591 = vmatprep.subr.mxu0 0.0
    %592 = vmatpush1.msra.mxu0 0.0
    %593 = vmatprep.subr.mxu0 0.0
    %594 = vmatpush1.msra.mxu0 0.0
    %595 = vmatprep.subr.mxu0 0.0
    %596 = vmatpush1.msra.mxu0 0.0
    %597 = vmatprep.subr.mxu0 0.0
    %598 = vmatpush1.msra.mxu0 0.0
    %599 = vmatprep.subr.mxu0 0.0
    %600 = vmatpush1.msra.mxu0 0.0
    %601 = vmatprep.subr.mxu0 0.0
    %602 = vmatpush1.msra.mxu0 0.0
    %603 = vmatprep.subr.mxu0 0.0
    %604 = vmatpush1.msra.mxu0 0.0
    %605 = vmatprep.subr.mxu0 0.0
    %606 = vmatpush1.msra.mxu0 0.0
    %607 = vmatprep.subr.mxu0 0.0
    %608 = vmatpush1.msra.mxu0 0.0
    %609 = vmatprep.subr.mxu0 0.0
    %610 = vmatpush1.msra.mxu0 0.0
    %611 = vmatprep.subr.mxu0 0.0
    %612 = vmatpush1.msra.mxu0 0.0
    %613 = vmatprep.subr.mxu0 0.0
    %614 = vmatpush1.msra.mxu0 0.0
    %615 = vmatprep.subr.mxu0 0.0
    %616 = vmatpush1.msra.mxu0 0.0
    %617 = vmatprep.mubr.f32.mxu0 0.0
    %618 = vmatmul.mubr.f32.gmra.mrb[0].mxu0 %v551
    %v619 = vpop.f32.mrb[0].mxu0
    %v620 = vadd.f32 0.0, %v619
    %v621 = vpop.f32.mrb[0].mxu0
    %622 = vdwg.mxu0
    %v624 = vsel %vm115, %v474, 0
    %626 = vmatprep.subr.mxu0 0.0
    %627 = vmatpush1.msra.mxu0 %v547
    %628 = vmatprep.subr.mxu0 0.0
    %629 = vmatpush1.msra.mxu0 0.0
    %630 = vmatprep.subr.mxu0 0.0
    %631 = vmatpush1.msra.mxu0 0.0
    %632 = vmatprep.subr.mxu0 0.0
    %633 = vmatpush1.msra.mxu0 0.0
    %634 = vmatprep.subr.mxu0 0.0
    %635 = vmatpush1.msra.mxu0 0.0
    %636 = vmatprep.subr.mxu0 0.0
    %637 = vmatpush1.msra.mxu0 0.0
    %638 = vmatprep.subr.mxu0 0.0
    %639 = vmatpush1.msra.mxu0 0.0
    %640 = vmatprep.subr.mxu0 0.0
    %641 = vmatpush1.msra.mxu0 0.0
    %642 = vmatprep.subr.mxu0 0.0
    %643 = vmatpush1.msra.mxu0 0.0
    %644 = vmatprep.subr.mxu0 0.0
    %645 = vmatpush1.msra.mxu0 0.0
    %646 = vmatprep.subr.mxu0 0.0
    %647 = vmatpush1.msra.mxu0 0.0
    %648 = vmatprep.subr.mxu0 0.0
    %649 = vmatpush1.msra.mxu0 0.0
    %650 = vmatprep.subr.mxu0 0.0
    %651 = vmatpush1.msra.mxu0 0.0
    %652 = vmatprep.subr.mxu0 0.0
    %653 = vmatpush1.msra.mxu0 0.0
    %654 = vmatprep.subr.mxu0 0.0
    %655 = vmatpush1.msra.mxu0 0.0
    %656 = vmatprep.subr.mxu0 0.0
    %657 = vmatpush1.msra.mxu0 0.0
    %658 = vmatprep.subr.mxu0 0.0
    %659 = vmatpush1.msra.mxu0 0.0
    %660 = vmatprep.subr.mxu0 0.0
    %661 = vmatpush1.msra.mxu0 0.0
    %662 = vmatprep.subr.mxu0 0.0
    %663 = vmatpush1.msra.mxu0 0.0
    %664 = vmatprep.subr.mxu0 0.0
    %665 = vmatpush1.msra.mxu0 0.0
    %666 = vmatprep.subr.mxu0 0.0
    %667 = vmatpush1.msra.mxu0 0.0
    %668 = vmatprep.subr.mxu0 0.0
    %669 = vmatpush1.msra.mxu0 0.0
    %670 = vmatprep.subr.mxu0 0.0
    %671 = vmatpush1.msra.mxu0 0.0
    %672 = vmatprep.subr.mxu0 0.0
    %673 = vmatpush1.msra.mxu0 0.0
    %674 = vmatprep.subr.mxu0 0.0
    %675 = vmatpush1.msra.mxu0 0.0
    %676 = vmatprep.subr.mxu0 0.0
    %677 = vmatpush1.msra.mxu0 0.0
    %678 = vmatprep.subr.mxu0 0.0
    %679 = vmatpush1.msra.mxu0 0.0
    %680 = vmatprep.subr.mxu0 0.0
    %681 = vmatpush1.msra.mxu0 0.0
    %682 = vmatprep.subr.mxu0 0.0
    %683 = vmatpush1.msra.mxu0 0.0
    %684 = vmatprep.subr.mxu0 0.0
    %685 = vmatpush1.msra.mxu0 0.0
    %686 = vmatprep.subr.mxu0 0.0
    %687 = vmatpush1.msra.mxu0 0.0
    %688 = vmatprep.subr.mxu0 0.0
    %689 = vmatpush1.msra.mxu0 0.0
    %690 = vmatprep.mubr.f32.mxu0 0.0
    %691 = vmatmul.mubr.f32.gmra.mrb[0].mxu0 %v624
    %v692 = vpop.f32.mrb[0].mxu0
    %v693 = vadd.f32 0.0, %v692
    %v694 = vpop.f32.mrb[0].mxu0
    %695 = vdwg.mxu0
    %696 = vst.msk [vmem:[%s4] sm:$0xff] %vm67, %v620
    %697 = vst.msk [vmem:[%s4 + $0x8] sm:$0xff] %vm67, %v693
    // Predicated region
    $region18: #{_lambda_.1} parent=1 // pred_check
      _
    $region19: #{_lambda_.1} parent=1 // pred_check_branch
      %699 = sbr.rel (0) target = $region21
    $region20: #{_lambda_.1} parent=1 // pred_region
      _
    $region21: #{_lambda_.1} parent=1 // pred_fallthru
      _
    // Predicated region
    $region22: #{_lambda_.1} parent=1 // pred_check
      _
    $region23: #{_lambda_.1} parent=1 // pred_check_branch
      %701 = sbr.rel (0) target = $region25
    $region24: #{_lambda_.1} parent=1 // pred_region
      %s703 = ssub.s32 256, 256
      %704 = vsyncadd [#allocation3], %s703
      %s705 = sshll.u32 [#allocation2], 4
      %s706 = int_to_ptr.vmem [resolvable:$true] %s705
      %711 = dma.vmem_to_hbm [thread:$0]  %s706, 256, %s5, [#allocation3], 128, 128, 8
    $region25: #{_lambda_.1} parent=1 // pred_fallthru
      _
    // Predicated region
    $region26: #{_lambda_.1} parent=1 // pred_check
      _
    $region27: #{_lambda_.1} parent=1 // pred_check_branch
      %713 = sbr.rel (0) target = $region29
    $region28: #{_lambda_.1} parent=1 // pred_region
      _
    $region29: #{_lambda_.1} parent=1 // pred_fallthru
      _
    // Predicated region
    $region30: #{_lambda_.1} parent=1 // pred_check
      _
    $region31: #{_lambda_.1} parent=1 // pred_check_branch
      %715 = sbr.rel (0) target = $region33
    $region32: #{_lambda_.1} parent=1 // pred_region
      %716 = dma.done [#allocation3], 256
    $region33: #{_lambda_.1} parent=1 // pred_fallthru
      _
    %717 = vsyncpa [#allocation3], 1

</llo_original>
